<compile_context>
chip_gen: v5e
topology: v5e:2x2
jax: 0.10.0
libtpu: 0.0.40
codegen_flags: <defaults>
</compile_context>

<pallas_src>
import functools

import jax
import jax.numpy as jnp
from jax import lax
from jax.experimental import pallas as pl
from jax.experimental.pallas import tpu as pltpu

ACT_DTYPE = jnp.bfloat16          # MXU-input / activation storage dtype
TM = 1024                         # max rows per M-tile (dense matmuls)
DENSE_VMEM_LIMIT = 32 * 1024 * 1024


def _sigmoid(x):
    # Kernel-only sigmoid: reciprocal goes to the EUP approx path.
    return pl.reciprocal(1.0 + jnp.exp(-x), approx=True)


# ---------------------------------------------------------------------------
# Fused dense matmul kernel (1x1 convs, SE FCs, heads, LSTM x@W_ih)
# ---------------------------------------------------------------------------
@functools.lru_cache(maxsize=None)
def _dense_kernel(has_pro, has_epi, act):
    """o = act( epi_affine( pro_swish(x) @ w + b ) ).

    pro : per-K BN affine + Swish on the input  (BN that precedes the conv)
    epi : per-N BN affine on the matmul result  (BN that follows the conv)
    act : "none" | "swish" | "sigmoid" applied last.
    """

    def kernel(*refs):
        it = iter(refs)
        x_ref, w_ref, b_ref = next(it), next(it), next(it)
        if has_pro:
            ps_ref, pt_ref = next(it), next(it)
        if has_epi:
            es_ref, et_ref = next(it), next(it)
        o_ref = next(it)

        x = x_ref[...]
        if has_pro:
            xf = x.astype(jnp.float32) * ps_ref[...] + pt_ref[...]
            xf = xf * _sigmoid(xf)
            x = xf.astype(w_ref.dtype)
        y = jnp.dot(x, w_ref[...], preferred_element_type=jnp.float32)
        y = y + b_ref[...]
        if has_epi:
            y = y * es_ref[...] + et_ref[...]
        if act == "swish":
            y = y * _sigmoid(y)
        elif act == "sigmoid":
            y = _sigmoid(y)
        o_ref[...] = y.astype(o_ref.dtype)

    return kernel


@functools.partial(jax.jit, static_argnames=("act", "out_dtype"))
def dense_fused(x, w, b, pro=None, epi=None, *, act="none", out_dtype=ACT_DTYPE):
    """x: (M, K); w: (K, N); b: (N,); pro=(scale_K, shift_K); epi=(scale_N, shift_N)."""
    M, K = x.shape
    N = w.shape[1]
    x = x.astype(w.dtype)
    tm = M if M <= TM else TM
    has_pro = pro is not None
    has_epi = epi is not None

    args = [x, w, jnp.reshape(b, (1, N)).astype(jnp.float32)]
    in_specs = [
        pl.BlockSpec((tm, K), lambda i: (i, 0)),
        pl.BlockSpec((K, N), lambda i: (0, 0)),
        pl.BlockSpec((1, N), lambda i: (0, 0)),
    ]
    if has_pro:
        args += [jnp.reshape(pro[0], (1, K)).astype(jnp.float32),
                 jnp.reshape(pro[1], (1, K)).astype(jnp.float32)]
        in_specs += [pl.BlockSpec((1, K), lambda i: (0, 0))] * 2
    if has_epi:
        args += [jnp.reshape(epi[0], (1, N)).astype(jnp.float32),
                 jnp.reshape(epi[1], (1, N)).astype(jnp.float32)]
        in_specs += [pl.BlockSpec((1, N), lambda i: (0, 0))] * 2

    return pl.pallas_call(
        _dense_kernel(has_pro, has_epi, act),
        out_shape=jax.ShapeDtypeStruct((M, N), out_dtype),
        grid=(pl.cdiv(M, tm),),
        in_specs=in_specs,
        out_specs=pl.BlockSpec((tm, N), lambda i: (i, 0)),
        compiler_params=pltpu.CompilerParams(
            dimension_semantics=("parallel",),
            vmem_limit_bytes=DENSE_VMEM_LIMIT),
    )(*args)


# ---------------------------------------------------------------------------
# Grouped conv: in-kernel tap accumulation, block-diagonal packed weights
# ---------------------------------------------------------------------------
@functools.partial(jax.jit, static_argnames=("stride", "groups"))
def grouped_conv_same(x, w, b, epi_scale, epi_shift, *, stride, groups):
    """Grouped Conv1d ('same' pad) + fused BN affine + Swish.

    x: (N, L, Cin) channels-last; w: (Cout, Cin // groups, k); b: (Cout,).
    Returns (N, Lout, Cout) in ACT_DTYPE.

    The kernel reads the padded activation ONCE (channel packs of 128 lanes),
    accumulates the k taps from strided row windows and multiplies by a
    block-diagonal (k, pc, nc) weight so results/stores are 128-lane dense.
    """
    n, l, cin = x.shape
    cout, cg, k = w.shape
    g = groups
    cog = cout // g
    lout = -(-l // stride)
    p = max(0, (lout - 1) * stride + k - l)
    lp = l + p
    xp = jnp.pad(x, ((0, 0), (p // 2, p - p // 2), (0, 0))).astype(ACT_DTYPE)

    # Pack consecutive groups so input/output channel blocks are 128 lanes.
    if cog < 128 and 128 % cog == 0 and g % (128 // cog) == 0:
        gp = 128 // cog
    else:
        gp = g                       # fallback: one pack = full channel dims
    gpacks = g // gp
    pc = gp * cg                     # input channels per pack
    nc = gp * cog                    # output channels per pack

    # Block-diagonal per-tap weights: wbd[j, t, gi*cg+ci, gi*cog+co].
    w_r = w.reshape(gpacks, gp, cog, cg, k)
    w_t = jnp.transpose(w_r, (0, 4, 1, 3, 2))                # (gpacks,k,gp,cg,cog)
    eye = jnp.eye(gp, dtype=w.dtype)
    wbd = jnp.einsum("jtgcd,gh->jtgchd", w_t, eye)
    wbd = wbd.reshape(gpacks, k, pc, nc).astype(ACT_DTYPE)

    bm = jnp.reshape(b, (gpacks, nc)).astype(jnp.float32)
    esm = jnp.reshape(epi_scale, (gpacks, nc)).astype(jnp.float32)
    etm = jnp.reshape(epi_shift, (gpacks, nc)).astype(jnp.float32)

    def kernel(x_ref, w_ref, b_ref, es_ref, et_ref, o_ref):
        acc = jnp.zeros((lout, nc), jnp.float32)
        for t in range(k):                           # unrolled tap accumulation
            if stride == 1:
                xt = x_ref[pl.ds(t, lout), :]
            else:
                xt = x_ref[pl.ds(t, lout, stride), :]
            acc = acc + jnp.dot(xt, w_ref[t], preferred_element_type=jnp.float32)
        y = acc + b_ref[...]
        y = y * es_ref[...] + et_ref[...]
        y = y * _sigmoid(y)
        o_ref[...] = y.astype(o_ref.dtype)

    return pl.pallas_call(
        kernel,
        out_shape=jax.ShapeDtypeStruct((n, lout, cout), ACT_DTYPE),
        grid=(n, gpacks),
        in_specs=[
            pl.BlockSpec((None, lp, pc), lambda i, j: (i, 0, j)),
            pl.BlockSpec((None, k, pc, nc), lambda i, j: (j, 0, 0, 0)),
            pl.BlockSpec((1, nc), lambda i, j: (j, 0)),
            pl.BlockSpec((1, nc), lambda i, j: (j, 0)),
            pl.BlockSpec((1, nc), lambda i, j: (j, 0)),
        ],
        out_specs=pl.BlockSpec((None, lout, nc), lambda i, j: (i, 0, j)),
        compiler_params=pltpu.CompilerParams(
            dimension_semantics=("parallel", "parallel")),
    )(xp, wbd, bm, esm, etm)


# ---------------------------------------------------------------------------
# Fused SE-scale + residual add (one HBM pass instead of 2-3 XLA passes)
# ---------------------------------------------------------------------------
def _se_residual_kernel(x_ref, se_ref, id_ref, o_ref):
    y = (x_ref[...].astype(jnp.float32) * se_ref[...].astype(jnp.float32)
         + id_ref[...].astype(jnp.float32))
    o_ref[...] = y.astype(o_ref.dtype)


@jax.jit
def se_residual(out, se, identity):
    """out: (N, L, C); se: (N, C); identity: (N, L, C). Returns out*se + identity."""
    n, l, c = out.shape
    cb = 128 if c % 128 == 0 else c
    se3 = se.reshape(n, 1, c).astype(jnp.float32)
    identity = identity.astype(out.dtype)
    return pl.pallas_call(
        _se_residual_kernel,
        out_shape=jax.ShapeDtypeStruct((n, l, c), out.dtype),
        grid=(n, c // cb),
        in_specs=[
            pl.BlockSpec((None, l, cb), lambda i, j: (i, 0, j)),
            pl.BlockSpec((None, 1, cb), lambda i, j: (i, 0, j)),
            pl.BlockSpec((None, l, cb), lambda i, j: (i, 0, j)),
        ],
        out_specs=pl.BlockSpec((None, l, cb), lambda i, j: (i, 0, j)),
        compiler_params=pltpu.CompilerParams(
            dimension_semantics=("parallel", "parallel")),
    )(out, se3, identity)


# ---------------------------------------------------------------------------
# LSTM: final hidden state
# ---------------------------------------------------------------------------
@jax.jit
def lstm_final_hidden(xs, w_ih_p, w_hh_p, b_p):
    """Single-layer LSTM over xs: (T, B, H); returns final hidden state (B, H).

    Gate blocks are padded to Hp = roundup(H, 128) lanes; the padded lanes
    stay exactly zero through the recurrence.  W_hh is bf16 on the MXU,
    h/c state is f32.
    """
    T, B, H = xs.shape
    Hp = w_hh_p.shape[0]
    G = 4 * Hp

    # x @ W_ih^T + (b_ih + b_hh), precomputed for all timesteps in one matmul.
    xg = dense_fused(xs.reshape(T * B, H), w_ih_p.astype(ACT_DTYPE), b_p,
                     act="none", out_dtype=jnp.float32)
    xg = xg.reshape(T, B, G)

    Tc = T if T <= 128 else 128                     # timesteps per grid step
    n_chunks = pl.cdiv(T, Tc)
    Tpad = n_chunks * Tc
    masked = Tpad != T
    if masked:
        xg = jnp.pad(xg, ((0, Tpad - T), (0, 0), (0, 0)))

    flat = (B % 8 == 0)                             # lane/sublane-dense layout
    if flat:
        xg = xg.reshape(Tpad * B, G)
        xg_spec = pl.BlockSpec((Tc * B, G), lambda c: (c, 0))
    else:
        xg_spec = pl.BlockSpec((Tc, B, G), lambda c: (c, 0, 0))

    w_hh_bf = w_hh_p.astype(ACT_DTYPE)

    def kernel(xg_ref, w_ref, o_ref, h_sc, c_sc):
        chunk = pl.program_id(0)

        @pl.when(chunk == 0)
        def _():
            h_sc[...] = jnp.zeros_like(h_sc)
            c_sc[...] = jnp.zeros_like(c_sc)

        def step(j, carry):
            h, c = carry
            if flat:
                xg_j = xg_ref[pl.ds(pl.multiple_of(j * B, 8), B), :]
            else:
                xg_j = xg_ref[j]
            gates = xg_j + jnp.dot(h.astype(w_ref.dtype), w_ref[...],
                                   preferred_element_type=jnp.float32)
            i_g = _sigmoid(gates[:, 0 * Hp:1 * Hp])
            f_g = _sigmoid(gates[:, 1 * Hp:2 * Hp])
            g_g = jnp.tanh(gates[:, 2 * Hp:3 * Hp])
            o_g = _sigmoid(gates[:, 3 * Hp:4 * Hp])
            c_new = f_g * c + i_g * g_g
            h_new = o_g * jnp.tanh(c_new)
            if masked:
                valid = (chunk * Tc + j) < T        # mask padded timesteps
                h = jnp.where(valid, h_new, h)
                c = jnp.where(valid, c_new, c)
            else:
                h, c = h_new, c_new
            return h, c

        h, c = lax.fori_loop(0, Tc, step, (h_sc[...], c_sc[...]),
                             unroll=min(8, Tc))
        h_sc[...] = h
        c_sc[...] = c

        @pl.when(chunk == pl.num_programs(0) - 1)
        def _():
            o_ref[...] = h                           # store h_T exactly once

    h_full = pl.pallas_call(
        kernel,
        out_shape=jax.ShapeDtypeStruct((B, Hp), jnp.float32),
        grid=(n_chunks,),
        in_specs=[xg_spec,
                  pl.BlockSpec((Hp, G), lambda c: (0, 0))],
        out_specs=pl.BlockSpec((B, Hp), lambda c: (0, 0)),
        scratch_shapes=[pltpu.VMEM((B, Hp), jnp.float32),
                        pltpu.VMEM((B, Hp), jnp.float32)],
        compiler_params=pltpu.CompilerParams(
            dimension_semantics=("arbitrary",)),
    )(xg, w_hh_bf)
    return h_full[:, :H]


# ---------------------------------------------------------------------------
# Layer wrappers (small reshapes are glue; matmuls run in Pallas kernels)
# ---------------------------------------------------------------------------
@functools.partial(jax.jit, static_argnames=("act",))
def conv1x1(x, w, b, pro=None, epi=None, *, act="none"):
    """1x1 Conv1d on channels-last x: (N, L, Cin); w: (Cout, Cin, 1)."""
    n, l, cin = x.shape
    cout = w.shape[0]
    wk = jnp.transpose(w.reshape(cout, cin)).astype(ACT_DTYPE)
    out = dense_fused(x.reshape(n * l, cin), wk, b, pro=pro, epi=epi, act=act)
    return out.reshape(n, l, cout)


@functools.partial(jax.jit, static_argnames=("stride",))
def conv1d_dense_same(x, w, b, epi, *, stride):
    """Dense Conv1d ('same' pad) + fused BN affine + Swish (stem conv, Cin=1).

    x: (N, L, Cin); w: (Cout, Cin, k); b: (Cout,). Returns (N, Lout, Cout).
    """
    n, l, cin = x.shape
    cout, _, k = w.shape
    lout = -(-l // stride)
    p = max(0, (lout - 1) * stride + k - l)
    xp = jnp.pad(x, ((0, 0), (p // 2, p - p // 2), (0, 0)))
    idx = (jnp.arange(lout) * stride)[:, None] + jnp.arange(k)[None, :]
    pat = xp[:, idx, :]                                        # (N, Lout, k, Cin)
    pat = jnp.transpose(pat, (0, 1, 3, 2)).reshape(n * lout, cin * k)
    wk = jnp.transpose(w.reshape(cout, cin * k)).astype(ACT_DTYPE)
    out = dense_fused(pat, wk, b, epi=epi, act="swish")
    return out.reshape(n, lout, cout)


@functools.partial(jax.jit, static_argnames=("act", "out_dtype"))
def linear(x, w, b, *, act="none", out_dtype=ACT_DTYPE):
    """x: (M, K); w: (N, K) (PyTorch Linear layout); b: (N,)."""
    return dense_fused(x, jnp.transpose(w).astype(ACT_DTYPE), b,
                       act=act, out_dtype=out_dtype)


@functools.partial(jax.jit, static_argnames=("k",))
def maxpool_same(x, *, k):
    """MaxPool1d(kernel=stride=k) with zero 'same' padding, channels-last.

    Note: zero padding matches the reference MyMaxPool1dPadSame (pads with 0).
    """
    n, l, c = x.shape
    lout = -(-l // k)
    p = lout * k - l
    xp = jnp.pad(x, ((0, 0), (p // 2, p - p // 2), (0, 0)))
    return jnp.max(xp.reshape(n, lout, k, c), axis=2)


# ---------------------------------------------------------------------------
# Deterministic parameter construction
# ---------------------------------------------------------------------------
class KeyGen:
    def __init__(self, key):
        self._key = key

    def __call__(self):
        self._key, sub = jax.random.split(self._key)
        return sub


def init_conv(kg, cin, cout, k, groups=1):
    fan_in = (cin // groups) * k
    w = jax.random.normal(kg(), (cout, cin // groups, k), jnp.float32) * fan_in ** -0.5
    b = jax.random.normal(kg(), (cout,), jnp.float32) * 0.01
    return w, b


def init_linear(kg, cin, cout):
    w = jax.random.normal(kg(), (cout, cin), jnp.float32) * cin ** -0.5
    b = jax.random.normal(kg(), (cout,), jnp.float32) * 0.01
    return w, b


def init_bn(kg, c, eps=1e-5):
    gamma = 1.0 + 0.1 * jax.random.normal(kg(), (c,), jnp.float32)
    beta = 0.1 * jax.random.normal(kg(), (c,), jnp.float32)
    mean = 0.1 * jax.random.normal(kg(), (c,), jnp.float32)
    var = 1.0 + 0.1 * jnp.abs(jax.random.normal(kg(), (c,), jnp.float32))
    scale = gamma / jnp.sqrt(var + eps)
    shift = beta - mean * scale
    return scale, shift


def make_block(kg, cin, cout, ratio, k, stride, groups, is_first, downsample):
    mid = int(cout * ratio)
    p = {"cfg": (cin, cout, mid, k, stride, groups, is_first, downsample)}
    if not is_first:
        p["bn1"] = init_bn(kg, cin)
    p["conv1"] = init_conv(kg, cin, mid, 1, 1)
    p["bn2"] = init_bn(kg, mid)
    p["conv2"] = init_conv(kg, mid, mid, k, groups)
    p["bn3"] = init_bn(kg, mid)
    p["conv3"] = init_conv(kg, mid, cout, 1, 1)
    p["se_fc1"] = init_linear(kg, cout, cout // 2)
    p["se_fc2"] = init_linear(kg, cout // 2, cout)
    return p


def make_net1d(kg, in_channels, base_filters, ratio, filter_list, m_blocks_list,
               kernel_size, stride, groups_width, n_classes):
    p = {"first_conv": init_conv(kg, in_channels, base_filters, kernel_size, 1),
         "first_bn": init_bn(kg, base_filters)}
    stages = []
    cin = base_filters
    for i_stage, (cout, m_blocks) in enumerate(zip(filter_list, m_blocks_list)):
        groups = cout // groups_width
        blocks = []
        for i_block in range(m_blocks):
            is_first = (i_stage == 0 and i_block == 0)
            if i_block == 0:
                blocks.append(make_block(kg, cin, cout, ratio, kernel_size,
                                         stride, groups, is_first, True))
            else:
                blocks.append(make_block(kg, cout, cout, ratio, kernel_size,
                                         1, groups, is_first, False))
        stages.append(blocks)
        cin = cout
    p["stages"] = stages
    p["dense"] = init_linear(kg, cin, n_classes)
    return p


def make_lstm(kg, H):
    """PyTorch-equivalent LSTM params, stored gate-padded to Hp = roundup(H,128)."""
    Hp = ((H + 127) // 128) * 128
    w_ih = jax.random.normal(kg(), (4 * H, H), jnp.float32) * H ** -0.5
    w_hh = jax.random.normal(kg(), (4 * H, H), jnp.float32) * H ** -0.5
    b_ih = jax.random.normal(kg(), (4 * H,), jnp.float32) * 0.01
    b_hh = jax.random.normal(kg(), (4 * H,), jnp.float32) * 0.01
    w_ih_p = jnp.zeros((H, 4 * Hp), jnp.float32)
    w_hh_p = jnp.zeros((Hp, 4 * Hp), jnp.float32)
    b_p = jnp.zeros((4 * Hp,), jnp.float32)
    for gate in range(4):                         # gate order: i, f, g, o
        w_ih_p = w_ih_p.at[:, gate * Hp:gate * Hp + H].set(
            jnp.transpose(w_ih[gate * H:(gate + 1) * H, :]))
        w_hh_p = w_hh_p.at[:H, gate * Hp:gate * Hp + H].set(
            jnp.transpose(w_hh[gate * H:(gate + 1) * H, :]))
        b_p = b_p.at[gate * Hp:gate * Hp + H].set(
            b_ih[gate * H:(gate + 1) * H] + b_hh[gate * H:(gate + 1) * H])
    return {"w_ih_p": w_ih_p, "w_hh_p": w_hh_p, "b_p": b_p}


def make_model(key, out_channels, n_classes):
    kg = KeyGen(key)
    return {
        "cnn": make_net1d(kg, 1, 256, 1, [256, 512, 512, 1024, 512],
                          [3, 3, 4, 4, 3], 8, 2, 16, out_channels),
        "lstm": make_lstm(kg, out_channels),
        "dense": init_linear(kg, out_channels, n_classes),
    }


# ---------------------------------------------------------------------------
# Forward passes
# ---------------------------------------------------------------------------
def block_forward(p, x):
    cin, cout, mid, k, stride, groups, is_first, downsample = p["cfg"]
    identity = x

    # bn1+Swish fused as conv1 prologue; bn2+Swish as conv1 epilogue;
    # bn3+Swish as grouped-conv2 epilogue. Same op order as the reference.
    out = conv1x1(x, p["conv1"][0], p["conv1"][1],
                  pro=p.get("bn1"), epi=p["bn2"], act="swish")
    out = grouped_conv_same(out, p["conv2"][0], p["conv2"][1],
                            p["bn3"][0], p["bn3"][1],
                            stride=stride, groups=groups)
    out = conv1x1(out, p["conv3"][0], p["conv3"][1], act="none")

    # Squeeze-and-Excitation (activations fused into the dense kernels)
    se = jnp.mean(out, axis=1, dtype=jnp.float32)            # (NB, cout)
    se = linear(se, *p["se_fc1"], act="swish")
    se = linear(se, *p["se_fc2"], act="sigmoid", out_dtype=jnp.float32)

    # identity path
    if downsample:
        identity = maxpool_same(identity, k=stride)
    if cout != cin:
        ch1 = (cout - cin) // 2
        ch2 = (cout - cin) - ch1
        # negative padding crops channels (matches F.pad for the 1024 -> 512 case)
        identity = lax.pad(identity, jnp.zeros((), identity.dtype),
                           [(0, 0, 0), (0, 0, 0), (ch1, ch2, 0)])

    # fused: out * se[:, None, :] + identity  (single Pallas HBM pass)
    return se_residual(out, se, identity)


def net1d_forward(p, x):
    # x: (NB, L, Cin=1) channels-last
    out = conv1d_dense_same(x.astype(ACT_DTYPE), p["first_conv"][0],
                            p["first_conv"][1], p["first_bn"], stride=2)
    for stage in p["stages"]:
        for blk in stage:
            out = block_forward(blk, out)
    out = jnp.mean(out, axis=1, dtype=jnp.float32)            # global average pool
    out = linear(out, *p["dense"], act="none", out_dtype=jnp.float32)
    return out


def forward(params, x, n_len_seg, out_channels):
    B, n_channel, n_length = x.shape
    assert n_length % n_len_seg == 0, "Input n_length should divided by n_len_seg"
    n_seg = n_length // n_len_seg
    # (B, C, L) -> (B*n_seg, n_len_seg, C)   (channels-last segments)
    segs = jnp.transpose(x, (0, 2, 1)).reshape(B * n_seg, n_len_seg, n_channel)
    feat = net1d_forward(params["cnn"], segs)                 # (B*n_seg, H)
    H = out_channels
    xs = jnp.transpose(feat.reshape(B, n_seg, H), (1, 0, 2))  # (T, B, H)
    lstm = params["lstm"]
    h = lstm_final_hidden(xs, lstm["w_ih_p"], lstm["w_hh_p"], lstm["b_p"])  # (B, H)
    return linear(h, *params["dense"], act="none", out_dtype=jnp.float32)


# ---------------------------------------------------------------------------
if __name__ == "__main__":
    B, n_length = 2, 64
    n_len_seg, out_channels, n_classes = 16, 32, 5

    root = jax.random.PRNGKey(0)
    x_key, param_key = jax.random.split(root)
    params = make_model(param_key, out_channels, n_classes)
    x = jax.random.normal(x_key, (B, 1, n_length), jnp.float32)

    out = forward(params, x, n_len_seg, out_channels)
    out = jax.block_until_ready(out)

    assert out.shape == (B, n_classes), out.shape
    assert bool(jnp.all(jnp.isfinite(out)))
    print("KERNEL_OK")
</pallas_src>

<mosaic_0001>
module attributes {stable_mosaic.version = 11 : i64} {
  func.func @kernel(%arg0: i32, %arg1: memref<64x8xbf16, #tpu.memory_space<vmem>>, %arg2: memref<8x256xbf16, #tpu.memory_space<vmem>>, %arg3: memref<1x256xf32, #tpu.memory_space<vmem>>, %arg4: memref<1x256xf32, #tpu.memory_space<vmem>>, %arg5: memref<1x256xf32, #tpu.memory_space<vmem>>, %arg6: memref<64x256xbf16, #tpu.memory_space<vmem>>) attributes {dimension_semantics = [#tpu.dimension_semantics<parallel>], iteration_bounds = array<i64: 1>, scalar_prefetch = 0 : i64, scratch_operands = 0 : i64, tpu.core_type = #tpu.core_type<tc>, window_params = [{transform_indices = @transform_0, window_bounds = array<i64: 64, 8>}, {pipeline_mode = #tpu.pipeline_mode<synchronous>, transform_indices = @transform_1, window_bounds = array<i64: 8, 256>}, {pipeline_mode = #tpu.pipeline_mode<synchronous>, transform_indices = @transform_2, window_bounds = array<i64: 1, 256>}, {pipeline_mode = #tpu.pipeline_mode<synchronous>, transform_indices = @transform_3, window_bounds = array<i64: 1, 256>}, {pipeline_mode = #tpu.pipeline_mode<synchronous>, transform_indices = @transform_4, window_bounds = array<i64: 1, 256>}, {transform_indices = @transform_5, window_bounds = array<i64: 64, 256>}]} {
    %c0 = arith.constant 0 : index
    %c0_0 = arith.constant 0 : index
    %0 = vector.load %arg1[%c0, %c0_0] : memref<64x8xbf16, #tpu.memory_space<vmem>>, vector<64x8xbf16>
    %c0_1 = arith.constant 0 : index
    %c0_2 = arith.constant 0 : index
    %1 = vector.load %arg2[%c0_1, %c0_2] : memref<8x256xbf16, #tpu.memory_space<vmem>>, vector<8x256xbf16>
    %cst = arith.constant dense<0.000000e+00> : vector<64x256xf32>
    %2 = tpu.matmul %0, %1, %cst {dimension_numbers = #tpu.dot_dimension_numbers<[1], [0], [0], [1], [0, 0, 1, 1], [], []>} : vector<64x8xbf16>, vector<8x256xbf16>, vector<64x256xf32> -> vector<64x256xf32>
    %c0_3 = arith.constant 0 : index
    %c0_4 = arith.constant 0 : index
    %3 = vector.load %arg3[%c0_3, %c0_4] : memref<1x256xf32, #tpu.memory_space<vmem>>, vector<1x256xf32>
    %4 = vector.broadcast %3 : vector<1x256xf32> to vector<64x256xf32>
    %5 = arith.addf %2, %4 : vector<64x256xf32>
    %c0_5 = arith.constant 0 : index
    %c0_6 = arith.constant 0 : index
    %6 = vector.load %arg4[%c0_5, %c0_6] : memref<1x256xf32, #tpu.memory_space<vmem>>, vector<1x256xf32>
    %7 = vector.broadcast %6 : vector<1x256xf32> to vector<64x256xf32>
    %8 = arith.mulf %5, %7 : vector<64x256xf32>
    %c0_7 = arith.constant 0 : index
    %c0_8 = arith.constant 0 : index
    %9 = vector.load %arg5[%c0_7, %c0_8] : memref<1x256xf32, #tpu.memory_space<vmem>>, vector<1x256xf32>
    %10 = vector.broadcast %9 : vector<1x256xf32> to vector<64x256xf32>
    %11 = arith.addf %8, %10 : vector<64x256xf32>
    %cst_9 = arith.constant 0.000000e+00 : f32
    %12 = vector.broadcast %cst_9 : f32 to vector<64x256xf32>
    %13 = arith.subf %12, %11 : vector<64x256xf32>
    %14 = math.exp %13 : vector<64x256xf32>
    %cst_10 = arith.constant 1.000000e+00 : f32
    %15 = vector.broadcast %cst_10 : f32 to vector<64x256xf32>
    %16 = arith.addf %15, %14 : vector<64x256xf32>
    %17 = tpu.reciprocal %16 {approx = true} : vector<64x256xf32> -> vector<64x256xf32>
    %18 = arith.mulf %11, %17 : vector<64x256xf32>
    %19 = arith.truncf %18 : vector<64x256xf32> to vector<64x256xbf16>
    %c0_11 = arith.constant 0 : index
    %c0_12 = arith.constant 0 : index
    %20 = vector.load %arg6[%c0_11, %c0_12] : memref<64x256xbf16, #tpu.memory_space<vmem>>, vector<64x256xbf16>
    tpu.vector_store %arg6[%c0_11, %c0_12], %19 {strides = array<i32>} : memref<64x256xbf16, #tpu.memory_space<vmem>>, vector<64x256xbf16>,
    return
  }
  func.func @transform_0(%arg0: i32) -> (i32, i32) {
    %c0_i32 = arith.constant 0 : i32
    %c0_i32_0 = arith.constant 0 : i32
    return %arg0, %c0_i32 : i32, i32
  }
  func.func @transform_1(%arg0: i32) -> (i32, i32) {
    %c0_i32 = arith.constant 0 : i32
    %c0_i32_0 = arith.constant 0 : i32
    %c0_i32_1 = arith.constant 0 : i32
    return %c0_i32, %c0_i32_0 : i32, i32
  }
  func.func @transform_2(%arg0: i32) -> (i32, i32) {
    %c0_i32 = arith.constant 0 : i32
    %c0_i32_0 = arith.constant 0 : i32
    %c0_i32_1 = arith.constant 0 : i32
    return %c0_i32, %c0_i32_0 : i32, i32
  }
  func.func @transform_3(%arg0: i32) -> (i32, i32) {
    %c0_i32 = arith.constant 0 : i32
    %c0_i32_0 = arith.constant 0 : i32
    %c0_i32_1 = arith.constant 0 : i32
    return %c0_i32, %c0_i32_0 : i32, i32
  }
  func.func @transform_4(%arg0: i32) -> (i32, i32) {
    %c0_i32 = arith.constant 0 : i32
    %c0_i32_0 = arith.constant 0 : i32
    %c0_i32_1 = arith.constant 0 : i32
    return %c0_i32, %c0_i32_0 : i32, i32
  }
  func.func @transform_5(%arg0: i32) -> (i32, i32) {
    %c0_i32 = arith.constant 0 : i32
    %c0_i32_0 = arith.constant 0 : i32
    return %arg0, %c0_i32 : i32, i32
  }
}

</mosaic_0001>

<llo_original>
// kernel: dense_fused.1
$region0: #{dense_fused.1}
  #allocation0 [shape = 'u32[]', space=smem, size = 0x4, offset = 0x4, fixed_abs, tag = 'smem constant byte address 0x4 - core index']
  #allocation1 [shape = 'u32[72,128]{1,0:T(1,128)}', space=vmem, size = 0x9000, scoped, tag = 'internal scratch']
  %s0 = inlined_call_operand.vmem [shape: bf16[64,8], index: 0, kind: input, shape index: {}]
  %s1 = inlined_call_operand.vmem [shape: bf16[8,256], index: 1, kind: input, shape index: {}]
  %s2 = inlined_call_operand.vmem [shape: f32[1,256], index: 2, kind: input, shape index: {}]
  %s3 = inlined_call_operand.vmem [shape: f32[1,256], index: 3, kind: input, shape index: {}]
  %s4 = inlined_call_operand.vmem [shape: f32[1,256], index: 4, kind: input, shape index: {}]
  %s5 = inlined_call_operand.hbm [shape: bf16[64,256], index: 5, kind: output, shape index: {}]
  %s6 = sld [smem:[#allocation0]]
  $region30: #{dense_fused.1} parent=0
    _
  %s8 = ssub.s32 1, %s6
  %s9 = scalar_select 0, %s8, %s6
  $region1: #{dense_fused.1} parent=0
    #allocation2 [shape = 'u8[32768]{0}', space=vmem, size = 0x8000, scoped, tag = 'output window, operand 0, single buffered']
    #allocation3 [shape = 's32[1]{0}', space=sflag, size = 0x4, scoped, tag = 'scoped memory for dense_fused.1']
    %10 = vsyncpa [#allocation3], 0
    // Predicated region
    $region2: #{dense_fused.1} parent=1 // pred_check
      _
    $region3: #{dense_fused.1} parent=1 // pred_check_branch
      %12 = sbr.rel (0) target = $region5
    $region4: #{dense_fused.1} parent=1 // pred_region
      _
    $region5: #{dense_fused.1} parent=1 // pred_fallthru
      _
    // Predicated region
    $region6: #{dense_fused.1} parent=1 // pred_check
      _
    $region7: #{dense_fused.1} parent=1 // pred_check_branch
      %14 = sbr.rel (0) target = $region9
    $region8: #{dense_fused.1} parent=1 // pred_region
      _
    $region9: #{dense_fused.1} parent=1 // pred_fallthru
      _
    // Predicated region
    $region10: #{dense_fused.1} parent=1 // pred_check
      _
    $region11: #{dense_fused.1} parent=1 // pred_check_branch
      %16 = sbr.rel (0) target = $region13
    $region12: #{dense_fused.1} parent=1 // pred_region
      _
    $region13: #{dense_fused.1} parent=1 // pred_fallthru
      _
    // Predicated region
    $region14: #{dense_fused.1} parent=1 // pred_check
      _
    $region15: #{dense_fused.1} parent=1 // pred_check_branch
      %18 = sbr.rel (0) target = $region17
    $region16: #{dense_fused.1} parent=1 // pred_region
      _
    $region17: #{dense_fused.1} parent=1 // pred_fallthru
      _
    // Predicated region
    $region18: #{dense_fused.1} parent=1 // pred_check
      _
    $region19: #{dense_fused.1} parent=1 // pred_check_branch
      %20 = sbr.rel (0) target = $region21
    $region20: #{dense_fused.1} parent=1 // pred_region
      _
    $region21: #{dense_fused.1} parent=1 // pred_fallthru
      _
    %v22 = vld [vmem:[%s0] sm:$0xf]
    %v23 = vld [vmem:[%s0 + $0x4] sm:$0xf]
    %v24 = vld [vmem:[%s0 + $0x8] sm:$0xf]
    %v25 = vld [vmem:[%s0 + $0xc] sm:$0xf]
    %v26 = vld [vmem:[%s0 + $0x10] sm:$0xf]
    %v27 = vld [vmem:[%s0 + $0x14] sm:$0xf]
    %v28 = vld [vmem:[%s0 + $0x18] sm:$0xf]
    %v29 = vld [vmem:[%s0 + $0x1c] sm:$0xf]
    %v30 = vld [vmem:[%s1] sm:$0xff]
    %v31 = vld [vmem:[%s2] sm:$0x3]
    %v33 = vperm.slane %v31, 0
    %v34 = vperm.slane %v31, 1
    %v45 = vunpack.c.l.b16 %v22
    %v46 = vunpack.c.l.b16 %v23
    %v47 = vunpack.c.l.b16 %v24
    %v48 = vunpack.c.l.b16 %v25
    %v49 = vunpack.c.l.b16 %v26
    %v50 = vunpack.c.l.b16 %v27
    %v51 = vunpack.c.l.b16 %v28
    %v52 = vunpack.c.l.b16 %v29
    %v53 = vpack.c.b16 %v46, %v45
    %v54 = vpack.c.b16 %v48, %v47
    %v55 = vpack.c.b16 %v50, %v49
    %v56 = vpack.c.b16 %v52, %v51
    %v58 = vunpack.c.l.b16 %v30
    %v59 = vunpack.c.h.b16 %v30
    %v60 = vpack.c.b16 %v58, %v58
    %v61 = vpack.c.b16 %v59, %v59
    %vm62 = vcmask 64512
    %v64 = vsel %vm62, %v53, 0
    %v67 = vsel %vm62, %v54, 0
    %v70 = vsel %vm62, %v55, 0
    %v73 = vsel %vm62, %v56, 0
    %vm75 = vcmask 1043456
    %v77 = vsel %vm75, %v60, 0
    %v80 = vsel %vm75, %v61, 0
    %82 = vmatpush.bf16.msra.mxu0 0
    %83 = vmatpush.bf16.msra.mxu0 0
    %84 = vmatpush.bf16.msra.mxu0 0
    %85 = vmatpush.bf16.msra.mxu0 0
    %86 = vmatpush.bf16.msra.mxu0 0
    %87 = vmatpush.bf16.msra.mxu0 0
    %88 = vmatpush.bf16.msra.mxu0 0
    %89 = vmatpush.bf16.msra.mxu0 %v77
    %90 = vmatmul.bf16.gmra.mxu0 %v64
    %v91 = vpop.f32.mrf.mxu0
    %v92 = vadd.f32 %v33, %v91
    %v93 = vpop.f32.mrf.mxu0
    %v94 = vadd.f32 %v33, %v93
    %95 = vmatmul.bf16.gmra.mxu0 %v67
    %v96 = vpop.f32.mrf.mxu0
    %v97 = vadd.f32 %v33, %v96
    %v98 = vpop.f32.mrf.mxu0
    %v99 = vadd.f32 %v33, %v98
    %100 = vmatmul.bf16.gmra.mxu0 %v70
    %v101 = vpop.f32.mrf.mxu0
    %v102 = vadd.f32 %v33, %v101
    %v103 = vpop.f32.mrf.mxu0
    %v104 = vadd.f32 %v33, %v103
    %105 = vmatmul.bf16.gmra.mxu0 %v73
    %v106 = vpop.f32.mrf.mxu0
    %v107 = vadd.f32 %v33, %v106
    %v108 = vpop.f32.mrf.mxu0
    %v109 = vadd.f32 %v33, %v108
    %110 = vdwg.mxu0
    %111 = vmatpush.bf16.msra.mxu0 0
    %112 = vmatpush.bf16.msra.mxu0 0
    %113 = vmatpush.bf16.msra.mxu0 0
    %114 = vmatpush.bf16.msra.mxu0 0
    %115 = vmatpush.bf16.msra.mxu0 0
    %116 = vmatpush.bf16.msra.mxu0 0
    %117 = vmatpush.bf16.msra.mxu0 0
    %118 = vmatpush.bf16.msra.mxu0 %v80
    %119 = vmatmul.bf16.gmra.mxu0 %v64
    %v120 = vpop.f32.mrf.mxu0
    %v121 = vadd.f32 %v34, %v120
    %v122 = vpop.f32.mrf.mxu0
    %v123 = vadd.f32 %v34, %v122
    %124 = vmatmul.bf16.gmra.mxu0 %v67
    %v125 = vpop.f32.mrf.mxu0
    %v126 = vadd.f32 %v34, %v125
    %v127 = vpop.f32.mrf.mxu0
    %v128 = vadd.f32 %v34, %v127
    %129 = vmatmul.bf16.gmra.mxu0 %v70
    %v130 = vpop.f32.mrf.mxu0
    %v131 = vadd.f32 %v34, %v130
    %v132 = vpop.f32.mrf.mxu0
    %v133 = vadd.f32 %v34, %v132
    %134 = vmatmul.bf16.gmra.mxu0 %v73
    %v135 = vpop.f32.mrf.mxu0
    %v136 = vadd.f32 %v34, %v135
    %v137 = vpop.f32.mrf.mxu0
    %v138 = vadd.f32 %v34, %v137
    %139 = vdwg.mxu0
    %v140 = vld [vmem:[%s3] sm:$0x3]
    %v142 = vperm.slane %v140, 0
    %v143 = vperm.slane %v140, 1
    %v146 = vmul.f32 %v92, %v142
    %v147 = vmul.f32 %v121, %v143
    %v148 = vmul.f32 %v94, %v142
    %v149 = vmul.f32 %v123, %v143
    %v150 = vmul.f32 %v97, %v142
    %v151 = vmul.f32 %v126, %v143
    %v152 = vmul.f32 %v99, %v142
    %v153 = vmul.f32 %v128, %v143
    %v154 = vmul.f32 %v102, %v142
    %v155 = vmul.f32 %v131, %v143
    %v156 = vmul.f32 %v104, %v142
    %v157 = vmul.f32 %v133, %v143
    %v158 = vmul.f32 %v107, %v142
    %v159 = vmul.f32 %v136, %v143
    %v160 = vmul.f32 %v109, %v142
    %v161 = vmul.f32 %v138, %v143
    %v162 = vld [vmem:[%s4] sm:$0x3]
    %v164 = vperm.slane %v162, 0
    %v165 = vperm.slane %v162, 1
    %v168 = vadd.f32 %v146, %v164
    %v169 = vadd.f32 %v147, %v165
    %v170 = vadd.f32 %v148, %v164
    %v171 = vadd.f32 %v149, %v165
    %v172 = vadd.f32 %v150, %v164
    %v173 = vadd.f32 %v151, %v165
    %v174 = vadd.f32 %v152, %v164
    %v175 = vadd.f32 %v153, %v165
    %v176 = vadd.f32 %v154, %v164
    %v177 = vadd.f32 %v155, %v165
    %v178 = vadd.f32 %v156, %v164
    %v179 = vadd.f32 %v157, %v165
    %v180 = vadd.f32 %v158, %v164
    %v181 = vadd.f32 %v159, %v165
    %v182 = vadd.f32 %v160, %v164
    %v183 = vadd.f32 %v161, %v165
    %v184 = vsub.f32 0.0, %v168
    %v185 = vsub.f32 0.0, %v169
    %v186 = vsub.f32 0.0, %v170
    %v187 = vsub.f32 0.0, %v171
    %v188 = vsub.f32 0.0, %v172
    %v189 = vsub.f32 0.0, %v173
    %v190 = vsub.f32 0.0, %v174
    %v191 = vsub.f32 0.0, %v175
    %v192 = vsub.f32 0.0, %v176
    %v193 = vsub.f32 0.0, %v177
    %v194 = vsub.f32 0.0, %v178
    %v195 = vsub.f32 0.0, %v179
    %v196 = vsub.f32 0.0, %v180
    %v197 = vsub.f32 0.0, %v181
    %v198 = vsub.f32 0.0, %v182
    %v199 = vsub.f32 0.0, %v183
    %v200 = vmul.f32 %v184, 1.442695
    %v201 = vpow.pop %v200
    %v202 = vmul.f32 %v185, 1.442695
    %v203 = vpow.pop %v202
    %v204 = vmul.f32 %v186, 1.442695
    %v205 = vpow.pop %v204
    %v206 = vmul.f32 %v187, 1.442695
    %v207 = vpow.pop %v206
    %v208 = vmul.f32 %v188, 1.442695
    %v209 = vpow.pop %v208
    %v210 = vmul.f32 %v189, 1.442695
    %v211 = vpow.pop %v210
    %v212 = vmul.f32 %v190, 1.442695
    %v213 = vpow.pop %v212
    %v214 = vmul.f32 %v191, 1.442695
    %v215 = vpow.pop %v214
    %v216 = vmul.f32 %v192, 1.442695
    %v217 = vpow.pop %v216
    %v218 = vmul.f32 %v193, 1.442695
    %v219 = vpow.pop %v218
    %v220 = vmul.f32 %v194, 1.442695
    %v221 = vpow.pop %v220
    %v222 = vmul.f32 %v195, 1.442695
    %v223 = vpow.pop %v222
    %v224 = vmul.f32 %v196, 1.442695
    %v225 = vpow.pop %v224
    %v226 = vmul.f32 %v197, 1.442695
    %v227 = vpow.pop %v226
    %v228 = vmul.f32 %v198, 1.442695
    %v229 = vpow.pop %v228
    %v230 = vmul.f32 %v199, 1.442695
    %v231 = vpow.pop %v230
    %v232 = vadd.f32 %v201, 1.0
    %v233 = vadd.f32 %v203, 1.0
    %v234 = vadd.f32 %v205, 1.0
    %v235 = vadd.f32 %v207, 1.0
    %v236 = vadd.f32 %v209, 1.0
    %v237 = vadd.f32 %v211, 1.0
    %v238 = vadd.f32 %v213, 1.0
    %v239 = vadd.f32 %v215, 1.0
    %v240 = vadd.f32 %v217, 1.0
    %v241 = vadd.f32 %v219, 1.0
    %v242 = vadd.f32 %v221, 1.0
    %v243 = vadd.f32 %v223, 1.0
    %v244 = vadd.f32 %v225, 1.0
    %v245 = vadd.f32 %v227, 1.0
    %v246 = vadd.f32 %v229, 1.0
    %v247 = vadd.f32 %v231, 1.0
    %v248 = vrcp.pop %v232
    %v249 = vrcp.pop %v233
    %v250 = vrcp.pop %v234
    %v251 = vrcp.pop %v235
    %v252 = vrcp.pop %v236
    %v253 = vrcp.pop %v237
    %v254 = vrcp.pop %v238
    %v255 = vrcp.pop %v239
    %v256 = vrcp.pop %v240
    %v257 = vrcp.pop %v241
    %v258 = vrcp.pop %v242
    %v259 = vrcp.pop %v243
    %v260 = vrcp.pop %v244
    %v261 = vrcp.pop %v245
    %v262 = vrcp.pop %v246
    %v263 = vrcp.pop %v247
    %v264 = vmul.f32 %v168, %v248
    %v265 = vmul.f32 %v169, %v249
    %v266 = vmul.f32 %v170, %v250
    %v267 = vmul.f32 %v171, %v251
    %v268 = vmul.f32 %v172, %v252
    %v269 = vmul.f32 %v173, %v253
    %v270 = vmul.f32 %v174, %v254
    %v271 = vmul.f32 %v175, %v255
    %v272 = vmul.f32 %v176, %v256
    %v273 = vmul.f32 %v177, %v257
    %v274 = vmul.f32 %v178, %v258
    %v275 = vmul.f32 %v179, %v259
    %v276 = vmul.f32 %v180, %v260
    %v277 = vmul.f32 %v181, %v261
    %v278 = vmul.f32 %v182, %v262
    %v279 = vmul.f32 %v183, %v263
    %v280 = vpack.c.bf16 %v265, %v264
    %v281 = vpack.c.bf16 %v267, %v266
    %v282 = vpack.c.bf16 %v269, %v268
    %v283 = vpack.c.bf16 %v271, %v270
    %v284 = vpack.c.bf16 %v273, %v272
    %v285 = vpack.c.bf16 %v275, %v274
    %v286 = vpack.c.bf16 %v277, %v276
    %v287 = vpack.c.bf16 %v279, %v278
    %288 = vst [vmem:[#allocation2] sm:$0xff] %v280
    %289 = vst [vmem:[#allocation2 + $0x8] sm:$0xff] %v281
    %290 = vst [vmem:[#allocation2 + $0x10] sm:$0xff] %v282
    %291 = vst [vmem:[#allocation2 + $0x18] sm:$0xff] %v283
    %292 = vst [vmem:[#allocation2 + $0x20] sm:$0xff] %v284
    %293 = vst [vmem:[#allocation2 + $0x28] sm:$0xff] %v285
    %294 = vst [vmem:[#allocation2 + $0x30] sm:$0xff] %v286
    %295 = vst [vmem:[#allocation2 + $0x38] sm:$0xff] %v287
    // Predicated region
    $region22: #{dense_fused.1} parent=1 // pred_check
      _
    $region23: #{dense_fused.1} parent=1 // pred_check_branch
      %297 = sbr.rel (0) target = $region25
    $region24: #{dense_fused.1} parent=1 // pred_region
      %299 = vsyncadd [#allocation3], 0
      %s300 = sshll.u32 [#allocation2], 4
      %s301 = int_to_ptr.vmem [resolvable:$true] %s300
      %s302 = sshll.u32 %s5, 4
      %s303 = int_to_ptr.hbm [resolvable:$true] %s302
      %308 = dma.vmem_to_hbm [thread:$0]  %s301, 1024, %s303, [#allocation3], 128, 128, 8
    $region25: #{dense_fused.1} parent=1 // pred_fallthru
      _
    // Predicated region
    $region26: #{dense_fused.1} parent=1 // pred_check
      _
    $region27: #{dense_fused.1} parent=1 // pred_check_branch
      %310 = sbr.rel (0) target = $region29
    $region28: #{dense_fused.1} parent=1 // pred_region
      %312 = dma.done [#allocation3], 1024
    $region29: #{dense_fused.1} parent=1 // pred_fallthru
      _
    %313 = vsyncpa [#allocation3], 1

</llo_original>
